<compile_context>
chip_gen: v7x
topology: tpu7x:2x2x1
jax: 0.10.0
libtpu: 0.0.40
codegen_flags: <defaults>
</compile_context>

<pallas_src>
import functools

import jax
import jax.numpy as jnp
from jax.experimental import pallas as pl
from jax.experimental.pallas import tpu as pltpu

SEQ_LEN = 8
BATCH = 1
INPUT_SIZE = 4
HIDDEN_SIZE = 4
NUM_LAYERS = 1  # single layer, matching the PyTorch module default

_LANES = 128     # vreg lane width
_SUBLANES = 8    # vreg sublane count (f32)


def _round_up(n, m):
    return ((n + m - 1) // m) * m


def rnn_kernel(x_ref, wih_t_ref, whh_t_ref, b_ref, out_ref, *, seq_len, batch, hidden):
    """Whole-sequence RNN forward in a single (grid-less) kernel invocation.

    x_ref:     (SB_pad, 128)  all timestep inputs (t, b) order, zero-padded lanes
    wih_t_ref: (128, 128)     W_ih^T, zero-padded
    whh_t_ref: (8, 128)       W_hh^T, zero-padded
    b_ref:     (1, 128)       b_ih + b_hh, zero-padded
    out_ref:   (SB_pad, 128)  all hidden states; one full-tile store at the end
    """
    whh_t = whh_t_ref[...]          # (8, 128)
    bias = b_ref[...]               # (1, 128)

    # Batched input projection for all timesteps: one MXU-native matmul with
    # the bias folded in.  No sequential dependence -> off the critical path.
    zx = jnp.dot(x_ref[...], wih_t_ref[...],
                 preferred_element_type=jnp.float32) + bias      # (SB_pad, 128)

    # Hoist the H recurrent-weight rows once (static sublane slices).
    w_rows = [whh_t[i:i + 1, :] for i in range(hidden)]          # each (1, 128)

    # Sequential recurrence, fully unrolled (S is small and static).  The
    # matvec h @ W_hh^T is done entirely on the VPU: broadcast each lane
    # scalar h[:, i] against W_hh^T[i, :] and tree-sum the products.
    h = jnp.zeros((batch, _LANES), jnp.float32)
    rows = []
    for t in range(seq_len):
        z_t = zx[t * batch:(t + 1) * batch, :]                   # (B, 128)
        prods = [h[:, i:i + 1] * w_rows[i] for i in range(hidden)]
        while len(prods) > 1:                                    # pairwise tree sum
            nxt = [prods[k] + prods[k + 1] for k in range(0, len(prods) - 1, 2)]
            if len(prods) % 2:
                nxt.append(prods[-1])
            prods = nxt
        h = jnp.tanh(z_t + prods[0])                             # (B, 128)
        rows.append(h)

    out = jnp.concatenate(rows, axis=0)                          # (S*B, 128)
    pad_rows = out_ref.shape[0] - out.shape[0]
    if pad_rows:
        out = jnp.concatenate(
            [out, jnp.zeros((pad_rows, _LANES), jnp.float32)], axis=0)
    out_ref[...] = out                                           # one full-block store


def rnn_forward(x, w_ih, w_hh, b_ih, b_hh):
    """x: (S, B, I) float32 -> (S*B, H) float32 (PyTorch `out.view(-1, H)`)."""
    S, B, I = x.shape
    H = w_ih.shape[0]
    SB = S * B
    rows_out = _round_up(SB, _SUBLANES)

    # Lane-native (padded) operands.  In a real model the three weight/bias
    # operands are static: they would be prepared once and cached, not rebuilt
    # per call.  Under jit these pads fuse into the same XLA program anyway.
    x_pad = jnp.zeros((rows_out, _LANES), jnp.float32).at[:SB, :I].set(
        x.reshape(SB, I).astype(jnp.float32))
    wih_t_pad = jnp.zeros((_LANES, _LANES), jnp.float32).at[:I, :H].set(w_ih.T)
    whh_t_pad = jnp.zeros((_SUBLANES, _LANES), jnp.float32).at[:H, :H].set(w_hh.T)
    b_pad = jnp.zeros((1, _LANES), jnp.float32).at[0, :H].set(b_ih + b_hh)

    kernel = functools.partial(rnn_kernel, seq_len=S, batch=B, hidden=H)

    out_pad = pl.pallas_call(
        kernel,
        out_shape=jax.ShapeDtypeStruct((rows_out, _LANES), jnp.float32),
        in_specs=[
            pl.BlockSpec(memory_space=pltpu.MemorySpace.VMEM),  # x (padded)
            pl.BlockSpec(memory_space=pltpu.MemorySpace.VMEM),  # W_ih^T (padded)
            pl.BlockSpec(memory_space=pltpu.MemorySpace.VMEM),  # W_hh^T (padded)
            pl.BlockSpec(memory_space=pltpu.MemorySpace.VMEM),  # bias (padded)
        ],
        out_specs=pl.BlockSpec(memory_space=pltpu.MemorySpace.VMEM),
    )(x_pad, wih_t_pad, whh_t_pad, b_pad)

    return out_pad[:SB, :H]


# One jit region: padding + kernel + final slice fuse into a single dispatch.
rnn_forward_jit = jax.jit(rnn_forward)


def rnn_reference(x, w_ih, w_hh, b_ih, b_hh):
    """Pure-JAX reference matching torch.nn.RNN (tanh) semantics."""
    S, B, I = x.shape
    H = w_ih.shape[0]
    h = jnp.zeros((B, H), jnp.float32)
    outs = []
    for t in range(S):
        h = jnp.tanh(x[t] @ w_ih.T + b_ih + h @ w_hh.T + b_hh)
        outs.append(h)
    return jnp.stack(outs, 0).reshape(-1, H)


if __name__ == "__main__":
    key = jax.random.PRNGKey(0)
    k_x, k_wih, k_whh, k_bih, k_bhh = jax.random.split(key, 5)

    # PyTorch nn.RNN init: U(-1/sqrt(H), 1/sqrt(H)) for all params.
    bound = 1.0 / (HIDDEN_SIZE ** 0.5)
    x = jax.random.normal(k_x, (SEQ_LEN, BATCH, INPUT_SIZE), jnp.float32)
    w_ih = jax.random.uniform(k_wih, (HIDDEN_SIZE, INPUT_SIZE), jnp.float32, -bound, bound)
    w_hh = jax.random.uniform(k_whh, (HIDDEN_SIZE, HIDDEN_SIZE), jnp.float32, -bound, bound)
    b_ih = jax.random.uniform(k_bih, (HIDDEN_SIZE,), jnp.float32, -bound, bound)
    b_hh = jax.random.uniform(k_bhh, (HIDDEN_SIZE,), jnp.float32, -bound, bound)

    out = rnn_forward_jit(x, w_ih, w_hh, b_ih, b_hh)
    jax.block_until_ready(out)

    ref = rnn_reference(x, w_ih, w_hh, b_ih, b_hh)
    assert out.shape == (SEQ_LEN * BATCH, HIDDEN_SIZE), out.shape
    assert jnp.allclose(out, ref, atol=1e-5, rtol=1e-5), "mismatch vs reference"

    print("KERNEL_OK")
</pallas_src>

<mosaic_0001>
module attributes {stable_mosaic.version = 11 : i64} {
  func.func @rnn_kernel(%arg0: memref<8x128xf32, #tpu.memory_space<vmem>>, %arg1: memref<128x128xf32, #tpu.memory_space<vmem>>, %arg2: memref<8x128xf32, #tpu.memory_space<vmem>>, %arg3: memref<1x128xf32, #tpu.memory_space<vmem>>, %arg4: memref<8x128xf32, #tpu.memory_space<vmem>>) attributes {dimension_semantics = [], scalar_prefetch = 0 : i64, scratch_operands = 0 : i64, tpu.core_type = #tpu.core_type<tc>} {
    %c0 = arith.constant 0 : index
    %c0_0 = arith.constant 0 : index
    %0 = vector.load %arg2[%c0, %c0_0] : memref<8x128xf32, #tpu.memory_space<vmem>>, vector<8x128xf32>
    %c0_1 = arith.constant 0 : index
    %c0_2 = arith.constant 0 : index
    %1 = vector.load %arg3[%c0_1, %c0_2] : memref<1x128xf32, #tpu.memory_space<vmem>>, vector<1x128xf32>
    %c0_3 = arith.constant 0 : index
    %c0_4 = arith.constant 0 : index
    %2 = vector.load %arg0[%c0_3, %c0_4] : memref<8x128xf32, #tpu.memory_space<vmem>>, vector<8x128xf32>
    %c0_5 = arith.constant 0 : index
    %c0_6 = arith.constant 0 : index
    %3 = vector.load %arg1[%c0_5, %c0_6] : memref<128x128xf32, #tpu.memory_space<vmem>>, vector<128x128xf32>
    %cst = arith.constant dense<0.000000e+00> : vector<8x128xf32>
    %4 = tpu.matmul %2, %3, %cst {dimension_numbers = #tpu.dot_dimension_numbers<[1], [0], [0], [1], [0, 0, 1, 1], [], []>} : vector<8x128xf32>, vector<128x128xf32>, vector<8x128xf32> -> vector<8x128xf32>
    %5 = vector.broadcast %1 : vector<1x128xf32> to vector<8x128xf32>
    %6 = arith.addf %4, %5 : vector<8x128xf32>
    %7 = vector.extract_strided_slice %0 {offsets = [0, 0], sizes = [1, 128], strides = [1, 1]} : vector<8x128xf32> to vector<1x128xf32>
    %8 = vector.extract_strided_slice %0 {offsets = [1, 0], sizes = [1, 128], strides = [1, 1]} : vector<8x128xf32> to vector<1x128xf32>
    %9 = vector.extract_strided_slice %0 {offsets = [2, 0], sizes = [1, 128], strides = [1, 1]} : vector<8x128xf32> to vector<1x128xf32>
    %10 = vector.extract_strided_slice %0 {offsets = [3, 0], sizes = [1, 128], strides = [1, 1]} : vector<8x128xf32> to vector<1x128xf32>
    %cst_7 = arith.constant 0.000000e+00 : f32
    %11 = vector.broadcast %cst_7 : f32 to vector<1x128xf32>
    %12 = vector.extract_strided_slice %6 {offsets = [0, 0], sizes = [1, 128], strides = [1, 1]} : vector<8x128xf32> to vector<1x128xf32>
    %13 = vector.extract_strided_slice %11 {offsets = [0, 0], sizes = [1, 1], strides = [1, 1]} : vector<1x128xf32> to vector<1x1xf32>
    %14 = vector.broadcast %13 : vector<1x1xf32> to vector<1x128xf32>
    %15 = arith.mulf %14, %7 : vector<1x128xf32>
    %16 = vector.extract_strided_slice %11 {offsets = [0, 1], sizes = [1, 1], strides = [1, 1]} : vector<1x128xf32> to vector<1x1xf32>
    %17 = vector.broadcast %16 : vector<1x1xf32> to vector<1x128xf32>
    %18 = arith.mulf %17, %8 : vector<1x128xf32>
    %19 = vector.extract_strided_slice %11 {offsets = [0, 2], sizes = [1, 1], strides = [1, 1]} : vector<1x128xf32> to vector<1x1xf32>
    %20 = vector.broadcast %19 : vector<1x1xf32> to vector<1x128xf32>
    %21 = arith.mulf %20, %9 : vector<1x128xf32>
    %22 = vector.extract_strided_slice %11 {offsets = [0, 3], sizes = [1, 1], strides = [1, 1]} : vector<1x128xf32> to vector<1x1xf32>
    %23 = vector.broadcast %22 : vector<1x1xf32> to vector<1x128xf32>
    %24 = arith.mulf %23, %10 : vector<1x128xf32>
    %25 = arith.addf %15, %18 : vector<1x128xf32>
    %26 = arith.addf %21, %24 : vector<1x128xf32>
    %27 = arith.addf %25, %26 : vector<1x128xf32>
    %28 = arith.addf %12, %27 : vector<1x128xf32>
    %29 = math.tanh %28 : vector<1x128xf32>
    %30 = vector.extract_strided_slice %6 {offsets = [1, 0], sizes = [1, 128], strides = [1, 1]} : vector<8x128xf32> to vector<1x128xf32>
    %31 = vector.extract_strided_slice %29 {offsets = [0, 0], sizes = [1, 1], strides = [1, 1]} : vector<1x128xf32> to vector<1x1xf32>
    %32 = vector.broadcast %31 : vector<1x1xf32> to vector<1x128xf32>
    %33 = arith.mulf %32, %7 : vector<1x128xf32>
    %34 = vector.extract_strided_slice %29 {offsets = [0, 1], sizes = [1, 1], strides = [1, 1]} : vector<1x128xf32> to vector<1x1xf32>
    %35 = vector.broadcast %34 : vector<1x1xf32> to vector<1x128xf32>
    %36 = arith.mulf %35, %8 : vector<1x128xf32>
    %37 = vector.extract_strided_slice %29 {offsets = [0, 2], sizes = [1, 1], strides = [1, 1]} : vector<1x128xf32> to vector<1x1xf32>
    %38 = vector.broadcast %37 : vector<1x1xf32> to vector<1x128xf32>
    %39 = arith.mulf %38, %9 : vector<1x128xf32>
    %40 = vector.extract_strided_slice %29 {offsets = [0, 3], sizes = [1, 1], strides = [1, 1]} : vector<1x128xf32> to vector<1x1xf32>
    %41 = vector.broadcast %40 : vector<1x1xf32> to vector<1x128xf32>
    %42 = arith.mulf %41, %10 : vector<1x128xf32>
    %43 = arith.addf %33, %36 : vector<1x128xf32>
    %44 = arith.addf %39, %42 : vector<1x128xf32>
    %45 = arith.addf %43, %44 : vector<1x128xf32>
    %46 = arith.addf %30, %45 : vector<1x128xf32>
    %47 = math.tanh %46 : vector<1x128xf32>
    %48 = vector.extract_strided_slice %6 {offsets = [2, 0], sizes = [1, 128], strides = [1, 1]} : vector<8x128xf32> to vector<1x128xf32>
    %49 = vector.extract_strided_slice %47 {offsets = [0, 0], sizes = [1, 1], strides = [1, 1]} : vector<1x128xf32> to vector<1x1xf32>
    %50 = vector.broadcast %49 : vector<1x1xf32> to vector<1x128xf32>
    %51 = arith.mulf %50, %7 : vector<1x128xf32>
    %52 = vector.extract_strided_slice %47 {offsets = [0, 1], sizes = [1, 1], strides = [1, 1]} : vector<1x128xf32> to vector<1x1xf32>
    %53 = vector.broadcast %52 : vector<1x1xf32> to vector<1x128xf32>
    %54 = arith.mulf %53, %8 : vector<1x128xf32>
    %55 = vector.extract_strided_slice %47 {offsets = [0, 2], sizes = [1, 1], strides = [1, 1]} : vector<1x128xf32> to vector<1x1xf32>
    %56 = vector.broadcast %55 : vector<1x1xf32> to vector<1x128xf32>
    %57 = arith.mulf %56, %9 : vector<1x128xf32>
    %58 = vector.extract_strided_slice %47 {offsets = [0, 3], sizes = [1, 1], strides = [1, 1]} : vector<1x128xf32> to vector<1x1xf32>
    %59 = vector.broadcast %58 : vector<1x1xf32> to vector<1x128xf32>
    %60 = arith.mulf %59, %10 : vector<1x128xf32>
    %61 = arith.addf %51, %54 : vector<1x128xf32>
    %62 = arith.addf %57, %60 : vector<1x128xf32>
    %63 = arith.addf %61, %62 : vector<1x128xf32>
    %64 = arith.addf %48, %63 : vector<1x128xf32>
    %65 = math.tanh %64 : vector<1x128xf32>
    %66 = vector.extract_strided_slice %6 {offsets = [3, 0], sizes = [1, 128], strides = [1, 1]} : vector<8x128xf32> to vector<1x128xf32>
    %67 = vector.extract_strided_slice %65 {offsets = [0, 0], sizes = [1, 1], strides = [1, 1]} : vector<1x128xf32> to vector<1x1xf32>
    %68 = vector.broadcast %67 : vector<1x1xf32> to vector<1x128xf32>
    %69 = arith.mulf %68, %7 : vector<1x128xf32>
    %70 = vector.extract_strided_slice %65 {offsets = [0, 1], sizes = [1, 1], strides = [1, 1]} : vector<1x128xf32> to vector<1x1xf32>
    %71 = vector.broadcast %70 : vector<1x1xf32> to vector<1x128xf32>
    %72 = arith.mulf %71, %8 : vector<1x128xf32>
    %73 = vector.extract_strided_slice %65 {offsets = [0, 2], sizes = [1, 1], strides = [1, 1]} : vector<1x128xf32> to vector<1x1xf32>
    %74 = vector.broadcast %73 : vector<1x1xf32> to vector<1x128xf32>
    %75 = arith.mulf %74, %9 : vector<1x128xf32>
    %76 = vector.extract_strided_slice %65 {offsets = [0, 3], sizes = [1, 1], strides = [1, 1]} : vector<1x128xf32> to vector<1x1xf32>
    %77 = vector.broadcast %76 : vector<1x1xf32> to vector<1x128xf32>
    %78 = arith.mulf %77, %10 : vector<1x128xf32>
    %79 = arith.addf %69, %72 : vector<1x128xf32>
    %80 = arith.addf %75, %78 : vector<1x128xf32>
    %81 = arith.addf %79, %80 : vector<1x128xf32>
    %82 = arith.addf %66, %81 : vector<1x128xf32>
    %83 = math.tanh %82 : vector<1x128xf32>
    %84 = vector.extract_strided_slice %6 {offsets = [4, 0], sizes = [1, 128], strides = [1, 1]} : vector<8x128xf32> to vector<1x128xf32>
    %85 = vector.extract_strided_slice %83 {offsets = [0, 0], sizes = [1, 1], strides = [1, 1]} : vector<1x128xf32> to vector<1x1xf32>
    %86 = vector.broadcast %85 : vector<1x1xf32> to vector<1x128xf32>
    %87 = arith.mulf %86, %7 : vector<1x128xf32>
    %88 = vector.extract_strided_slice %83 {offsets = [0, 1], sizes = [1, 1], strides = [1, 1]} : vector<1x128xf32> to vector<1x1xf32>
    %89 = vector.broadcast %88 : vector<1x1xf32> to vector<1x128xf32>
    %90 = arith.mulf %89, %8 : vector<1x128xf32>
    %91 = vector.extract_strided_slice %83 {offsets = [0, 2], sizes = [1, 1], strides = [1, 1]} : vector<1x128xf32> to vector<1x1xf32>
    %92 = vector.broadcast %91 : vector<1x1xf32> to vector<1x128xf32>
    %93 = arith.mulf %92, %9 : vector<1x128xf32>
    %94 = vector.extract_strided_slice %83 {offsets = [0, 3], sizes = [1, 1], strides = [1, 1]} : vector<1x128xf32> to vector<1x1xf32>
    %95 = vector.broadcast %94 : vector<1x1xf32> to vector<1x128xf32>
    %96 = arith.mulf %95, %10 : vector<1x128xf32>
    %97 = arith.addf %87, %90 : vector<1x128xf32>
    %98 = arith.addf %93, %96 : vector<1x128xf32>
    %99 = arith.addf %97, %98 : vector<1x128xf32>
    %100 = arith.addf %84, %99 : vector<1x128xf32>
    %101 = math.tanh %100 : vector<1x128xf32>
    %102 = vector.extract_strided_slice %6 {offsets = [5, 0], sizes = [1, 128], strides = [1, 1]} : vector<8x128xf32> to vector<1x128xf32>
    %103 = vector.extract_strided_slice %101 {offsets = [0, 0], sizes = [1, 1], strides = [1, 1]} : vector<1x128xf32> to vector<1x1xf32>
    %104 = vector.broadcast %103 : vector<1x1xf32> to vector<1x128xf32>
    %105 = arith.mulf %104, %7 : vector<1x128xf32>
    %106 = vector.extract_strided_slice %101 {offsets = [0, 1], sizes = [1, 1], strides = [1, 1]} : vector<1x128xf32> to vector<1x1xf32>
    %107 = vector.broadcast %106 : vector<1x1xf32> to vector<1x128xf32>
    %108 = arith.mulf %107, %8 : vector<1x128xf32>
    %109 = vector.extract_strided_slice %101 {offsets = [0, 2], sizes = [1, 1], strides = [1, 1]} : vector<1x128xf32> to vector<1x1xf32>
    %110 = vector.broadcast %109 : vector<1x1xf32> to vector<1x128xf32>
    %111 = arith.mulf %110, %9 : vector<1x128xf32>
    %112 = vector.extract_strided_slice %101 {offsets = [0, 3], sizes = [1, 1], strides = [1, 1]} : vector<1x128xf32> to vector<1x1xf32>
    %113 = vector.broadcast %112 : vector<1x1xf32> to vector<1x128xf32>
    %114 = arith.mulf %113, %10 : vector<1x128xf32>
    %115 = arith.addf %105, %108 : vector<1x128xf32>
    %116 = arith.addf %111, %114 : vector<1x128xf32>
    %117 = arith.addf %115, %116 : vector<1x128xf32>
    %118 = arith.addf %102, %117 : vector<1x128xf32>
    %119 = math.tanh %118 : vector<1x128xf32>
    %120 = vector.extract_strided_slice %6 {offsets = [6, 0], sizes = [1, 128], strides = [1, 1]} : vector<8x128xf32> to vector<1x128xf32>
    %121 = vector.extract_strided_slice %119 {offsets = [0, 0], sizes = [1, 1], strides = [1, 1]} : vector<1x128xf32> to vector<1x1xf32>
    %122 = vector.broadcast %121 : vector<1x1xf32> to vector<1x128xf32>
    %123 = arith.mulf %122, %7 : vector<1x128xf32>
    %124 = vector.extract_strided_slice %119 {offsets = [0, 1], sizes = [1, 1], strides = [1, 1]} : vector<1x128xf32> to vector<1x1xf32>
    %125 = vector.broadcast %124 : vector<1x1xf32> to vector<1x128xf32>
    %126 = arith.mulf %125, %8 : vector<1x128xf32>
    %127 = vector.extract_strided_slice %119 {offsets = [0, 2], sizes = [1, 1], strides = [1, 1]} : vector<1x128xf32> to vector<1x1xf32>
    %128 = vector.broadcast %127 : vector<1x1xf32> to vector<1x128xf32>
    %129 = arith.mulf %128, %9 : vector<1x128xf32>
    %130 = vector.extract_strided_slice %119 {offsets = [0, 3], sizes = [1, 1], strides = [1, 1]} : vector<1x128xf32> to vector<1x1xf32>
    %131 = vector.broadcast %130 : vector<1x1xf32> to vector<1x128xf32>
    %132 = arith.mulf %131, %10 : vector<1x128xf32>
    %133 = arith.addf %123, %126 : vector<1x128xf32>
    %134 = arith.addf %129, %132 : vector<1x128xf32>
    %135 = arith.addf %133, %134 : vector<1x128xf32>
    %136 = arith.addf %120, %135 : vector<1x128xf32>
    %137 = math.tanh %136 : vector<1x128xf32>
    %138 = vector.extract_strided_slice %6 {offsets = [7, 0], sizes = [1, 128], strides = [1, 1]} : vector<8x128xf32> to vector<1x128xf32>
    %139 = vector.extract_strided_slice %137 {offsets = [0, 0], sizes = [1, 1], strides = [1, 1]} : vector<1x128xf32> to vector<1x1xf32>
    %140 = vector.broadcast %139 : vector<1x1xf32> to vector<1x128xf32>
    %141 = arith.mulf %140, %7 : vector<1x128xf32>
    %142 = vector.extract_strided_slice %137 {offsets = [0, 1], sizes = [1, 1], strides = [1, 1]} : vector<1x128xf32> to vector<1x1xf32>
    %143 = vector.broadcast %142 : vector<1x1xf32> to vector<1x128xf32>
    %144 = arith.mulf %143, %8 : vector<1x128xf32>
    %145 = vector.extract_strided_slice %137 {offsets = [0, 2], sizes = [1, 1], strides = [1, 1]} : vector<1x128xf32> to vector<1x1xf32>
    %146 = vector.broadcast %145 : vector<1x1xf32> to vector<1x128xf32>
    %147 = arith.mulf %146, %9 : vector<1x128xf32>
    %148 = vector.extract_strided_slice %137 {offsets = [0, 3], sizes = [1, 1], strides = [1, 1]} : vector<1x128xf32> to vector<1x1xf32>
    %149 = vector.broadcast %148 : vector<1x1xf32> to vector<1x128xf32>
    %150 = arith.mulf %149, %10 : vector<1x128xf32>
    %151 = arith.addf %141, %144 : vector<1x128xf32>
    %152 = arith.addf %147, %150 : vector<1x128xf32>
    %153 = arith.addf %151, %152 : vector<1x128xf32>
    %154 = arith.addf %138, %153 : vector<1x128xf32>
    %155 = math.tanh %154 : vector<1x128xf32>
    %156 = tpu.concatenate %29, %47, %65, %83, %101, %119, %137, %155 in 0 : vector<1x128xf32>, vector<1x128xf32>, vector<1x128xf32>, vector<1x128xf32>, vector<1x128xf32>, vector<1x128xf32>, vector<1x128xf32>, vector<1x128xf32> -> vector<8x128xf32>
    %c0_8 = arith.constant 0 : index
    %c0_9 = arith.constant 0 : index
    %157 = vector.load %arg4[%c0_8, %c0_9] : memref<8x128xf32, #tpu.memory_space<vmem>>, vector<8x128xf32>
    tpu.vector_store %arg4[%c0_8, %c0_9], %156 {strides = array<i32>} : memref<8x128xf32, #tpu.memory_space<vmem>>, vector<8x128xf32>,
    return
  }
}

</mosaic_0001>

<llo_original>
// kernel: rnn_forward.1
$region0: #{rnn_forward.1}
  #allocation0 [shape = 'u32[]', space=smem, size = 0x4, offset = 0x4, fixed_abs, tag = 'smem constant byte address 0x4 - core index']
  #allocation1 [shape = 'u32[144,128]{1,0:T(1,128)}', space=vmem, size = 0x12000, scoped, tag = 'internal scratch']
  %s0 = inlined_call_operand.vmem [shape: f32[8,128], index: 0, kind: input, shape index: {}]
  %s1 = inlined_call_operand.vmem [shape: f32[128,128], index: 1, kind: input, shape index: {}]
  %s2 = inlined_call_operand.vmem [shape: f32[8,128], index: 2, kind: input, shape index: {}]
  %s3 = inlined_call_operand.vmem [shape: f32[1,128], index: 3, kind: input, shape index: {}]
  %s4 = inlined_call_operand.vmem [shape: f32[8,128], index: 4, kind: output, shape index: {}]
  %s5 = sld [smem:[#allocation0]]
  $region26: #{rnn_forward.1} parent=0
    _
  %s7 = ssub.s32 1, %s5
  %s8 = scalar_select 0, %s7, %s5
  // Predicated region
  $region2: #{rnn_forward.1} parent=0 // pred_check
    _
  $region3: #{rnn_forward.1} parent=0 // pred_check_branch
    %10 = sbr.rel (0) target = $region5
  $region4: #{rnn_forward.1} parent=0 // pred_region
    _
  $region5: #{rnn_forward.1} parent=0 // pred_fallthru
    _
  // Predicated region
  $region6: #{rnn_forward.1} parent=0 // pred_check
    _
  $region7: #{rnn_forward.1} parent=0 // pred_check_branch
    %12 = sbr.rel (0) target = $region9
  $region8: #{rnn_forward.1} parent=0 // pred_region
    _
  $region9: #{rnn_forward.1} parent=0 // pred_fallthru
    _
  // Predicated region
  $region10: #{rnn_forward.1} parent=0 // pred_check
    _
  $region11: #{rnn_forward.1} parent=0 // pred_check_branch
    %14 = sbr.rel (0) target = $region13
  $region12: #{rnn_forward.1} parent=0 // pred_region
    _
  $region13: #{rnn_forward.1} parent=0 // pred_fallthru
    _
  // Predicated region
  $region14: #{rnn_forward.1} parent=0 // pred_check
    _
  $region15: #{rnn_forward.1} parent=0 // pred_check_branch
    %16 = sbr.rel (0) target = $region17
  $region16: #{rnn_forward.1} parent=0 // pred_region
    _
  $region17: #{rnn_forward.1} parent=0 // pred_fallthru
    _
  %v17 = vld [vmem:[%s2] sm:$0xff]
  %v18 = vld [vmem:[%s3] sm:$0x1]
  %v19 = vld [vmem:[%s0] sm:$0xff]
  %v20 = vld [vmem:[%s1] sm:$0xff]
  %v21 = vld [vmem:[%s1 + $0x8] sm:$0xff]
  %v22 = vld [vmem:[%s1 + $0x10] sm:$0xff]
  %v23 = vld [vmem:[%s1 + $0x18] sm:$0xff]
  %v24 = vld [vmem:[%s1 + $0x20] sm:$0xff]
  %v25 = vld [vmem:[%s1 + $0x28] sm:$0xff]
  %v26 = vld [vmem:[%s1 + $0x30] sm:$0xff]
  %v27 = vld [vmem:[%s1 + $0x38] sm:$0xff]
  %v28 = vld [vmem:[%s1 + $0x40] sm:$0xff]
  %v29 = vld [vmem:[%s1 + $0x48] sm:$0xff]
  %v30 = vld [vmem:[%s1 + $0x50] sm:$0xff]
  %v31 = vld [vmem:[%s1 + $0x58] sm:$0xff]
  %v32 = vld [vmem:[%s1 + $0x60] sm:$0xff]
  %v33 = vld [vmem:[%s1 + $0x68] sm:$0xff]
  %v34 = vld [vmem:[%s1 + $0x70] sm:$0xff]
  %v35 = vld [vmem:[%s1 + $0x78] sm:$0xff]
  %v37 = vlaneseq
  %v38 = vshrl.u32 %v37, 7
  %v39 = vsub.s32 0, %v38
  %v40 = vrot.slane %v18, %v39
  %42 = vmatprep.subr.mxu0 0.0
  %43 = vmatpush1.msra.mxu0 %v20
  %44 = vmatprep.subr.mxu0 0.0
  %45 = vmatpush1.msra.mxu0 %v21
  %46 = vmatprep.subr.mxu0 0.0
  %47 = vmatpush1.msra.mxu0 %v22
  %48 = vmatprep.subr.mxu0 0.0
  %49 = vmatpush1.msra.mxu0 %v23
  %50 = vmatprep.subr.mxu0 0.0
  %51 = vmatpush1.msra.mxu0 %v24
  %52 = vmatprep.subr.mxu0 0.0
  %53 = vmatpush1.msra.mxu0 %v25
  %54 = vmatprep.subr.mxu0 0.0
  %55 = vmatpush1.msra.mxu0 %v26
  %56 = vmatprep.subr.mxu0 0.0
  %57 = vmatpush1.msra.mxu0 %v27
  %58 = vmatprep.subr.mxu0 0.0
  %59 = vmatpush1.msra.mxu0 %v28
  %60 = vmatprep.subr.mxu0 0.0
  %61 = vmatpush1.msra.mxu0 %v29
  %62 = vmatprep.subr.mxu0 0.0
  %63 = vmatpush1.msra.mxu0 %v30
  %64 = vmatprep.subr.mxu0 0.0
  %65 = vmatpush1.msra.mxu0 %v31
  %66 = vmatprep.subr.mxu0 0.0
  %67 = vmatpush1.msra.mxu0 %v32
  %68 = vmatprep.subr.mxu0 0.0
  %69 = vmatpush1.msra.mxu0 %v33
  %70 = vmatprep.subr.mxu0 0.0
  %71 = vmatpush1.msra.mxu0 %v34
  %72 = vmatprep.subr.mxu0 0.0
  %73 = vmatpush1.msra.mxu0 %v35
  %74 = vmatprep.subr.mxu0 0.0
  %75 = vmatpush1.msra.mxu0 0.0
  %76 = vmatprep.subr.mxu0 0.0
  %77 = vmatpush1.msra.mxu0 0.0
  %78 = vmatprep.subr.mxu0 0.0
  %79 = vmatpush1.msra.mxu0 0.0
  %80 = vmatprep.subr.mxu0 0.0
  %81 = vmatpush1.msra.mxu0 0.0
  %82 = vmatprep.subr.mxu0 0.0
  %83 = vmatpush1.msra.mxu0 0.0
  %84 = vmatprep.subr.mxu0 0.0
  %85 = vmatpush1.msra.mxu0 0.0
  %86 = vmatprep.subr.mxu0 0.0
  %87 = vmatpush1.msra.mxu0 0.0
  %88 = vmatprep.subr.mxu0 0.0
  %89 = vmatpush1.msra.mxu0 0.0
  %90 = vmatprep.subr.mxu0 0.0
  %91 = vmatpush1.msra.mxu0 0.0
  %92 = vmatprep.subr.mxu0 0.0
  %93 = vmatpush1.msra.mxu0 0.0
  %94 = vmatprep.subr.mxu0 0.0
  %95 = vmatpush1.msra.mxu0 0.0
  %96 = vmatprep.subr.mxu0 0.0
  %97 = vmatpush1.msra.mxu0 0.0
  %98 = vmatprep.subr.mxu0 0.0
  %99 = vmatpush1.msra.mxu0 0.0
  %100 = vmatprep.subr.mxu0 0.0
  %101 = vmatpush1.msra.mxu0 0.0
  %102 = vmatprep.subr.mxu0 0.0
  %103 = vmatpush1.msra.mxu0 0.0
  %104 = vmatprep.subr.mxu0 0.0
  %105 = vmatpush1.msra.mxu0 0.0
  %106 = vmatprep.mubr.f32.mxu0 0.0
  %107 = vmatmul.mubr.f32.gmra.mrb[0].mxu0 %v19
  %v108 = vpop.f32.mrb[0].mxu0
  %v109 = vadd.f32 %v40, %v108
  %v110 = vpop.f32.mrb[0].mxu0
  %111 = vdwg.mxu0
  %v112 = vmul.f32 %v17, 0.0
  %v114 = vrot.slane %v112, 1
  %v116 = vadd.f32 %v112, %v114
  %v118 = vrot.slane %v116, 2
  %v120 = vadd.f32 %v116, %v118
  %v121 = vadd.f32 %v109, %v120
  %v122 = vtanh.pop %v121
  %124 = vset.pattern.permute.xlu0 0
  %125 = vperm.xlu0 %124, %v122
  %v126 = vpop.permute.xlu0 %125
  %v128 = vmul.f32 %v126, %v17
  %129 = vset.pattern.permute.xlu0 1
  %130 = vperm.xlu0 %129, %v122
  %v131 = vpop.permute.xlu0 %130
  %v134 = vrot.slane %v17, 1
  %v136 = vmul.f32 %v131, %v134
  %137 = vset.pattern.permute.xlu0 2
  %138 = vperm.xlu0 %137, %v122
  %v139 = vpop.permute.xlu0 %138
  %v141 = vrot.slane %v17, 2
  %v143 = vmul.f32 %v139, %v141
  %144 = vset.pattern.permute.xlu0 3
  %145 = vperm.xlu0 %144, %v122
  %v146 = vpop.permute.xlu0 %145
  %v148 = vrot.slane %v17, 3
  %v150 = vmul.f32 %v146, %v148
  %v151 = vadd.f32 %v128, %v136
  %v152 = vadd.f32 %v143, %v150
  %v153 = vadd.f32 %v151, %v152
  %v155 = vrot.slane %v153, 7
  %v157 = vadd.f32 %v109, %v155
  %v158 = vtanh.pop %v157
  %160 = vset.pattern.permute.xlu0 0
  %161 = vperm.xlu0 %160, %v158
  %v162 = vpop.permute.xlu0 %161
  %v164 = vrot.slane %v17, 7
  %v166 = vmul.f32 %v162, %v164
  %167 = vset.pattern.permute.xlu0 1
  %168 = vperm.xlu0 %167, %v158
  %v169 = vpop.permute.xlu0 %168
  %v171 = vmul.f32 %v169, %v17
  %172 = vset.pattern.permute.xlu0 2
  %173 = vperm.xlu0 %172, %v158
  %v174 = vpop.permute.xlu0 %173
  %v176 = vmul.f32 %v174, %v134
  %177 = vset.pattern.permute.xlu0 3
  %178 = vperm.xlu0 %177, %v158
  %v179 = vpop.permute.xlu0 %178
  %v181 = vmul.f32 %v179, %v141
  %v182 = vadd.f32 %v166, %v171
  %v183 = vadd.f32 %v176, %v181
  %v184 = vadd.f32 %v182, %v183
  %v186 = vrot.slane %v184, 7
  %v188 = vadd.f32 %v109, %v186
  %v189 = vtanh.pop %v188
  %191 = vset.pattern.permute.xlu0 0
  %192 = vperm.xlu0 %191, %v189
  %v193 = vpop.permute.xlu0 %192
  %v195 = vrot.slane %v17, 6
  %v197 = vmul.f32 %v193, %v195
  %198 = vset.pattern.permute.xlu0 1
  %199 = vperm.xlu0 %198, %v189
  %v200 = vpop.permute.xlu0 %199
  %v202 = vmul.f32 %v200, %v164
  %203 = vset.pattern.permute.xlu0 2
  %204 = vperm.xlu0 %203, %v189
  %v205 = vpop.permute.xlu0 %204
  %v207 = vmul.f32 %v205, %v17
  %208 = vset.pattern.permute.xlu0 3
  %209 = vperm.xlu0 %208, %v189
  %v210 = vpop.permute.xlu0 %209
  %v212 = vmul.f32 %v210, %v134
  %v213 = vadd.f32 %v197, %v202
  %v214 = vadd.f32 %v207, %v212
  %v215 = vadd.f32 %v213, %v214
  %v217 = vrot.slane %v215, 7
  %v219 = vadd.f32 %v109, %v217
  %v220 = vtanh.pop %v219
  %222 = vset.pattern.permute.xlu0 0
  %223 = vperm.xlu0 %222, %v220
  %v224 = vpop.permute.xlu0 %223
  %v226 = vrot.slane %v17, 5
  %v228 = vmul.f32 %v224, %v226
  %229 = vset.pattern.permute.xlu0 1
  %230 = vperm.xlu0 %229, %v220
  %v231 = vpop.permute.xlu0 %230
  %v233 = vmul.f32 %v231, %v195
  %234 = vset.pattern.permute.xlu0 2
  %235 = vperm.xlu0 %234, %v220
  %v236 = vpop.permute.xlu0 %235
  %v238 = vmul.f32 %v236, %v164
  %239 = vset.pattern.permute.xlu0 3
  %240 = vperm.xlu0 %239, %v220
  %v241 = vpop.permute.xlu0 %240
  %v243 = vmul.f32 %v241, %v17
  %v244 = vadd.f32 %v228, %v233
  %v245 = vadd.f32 %v238, %v243
  %v246 = vadd.f32 %v244, %v245
  %v248 = vrot.slane %v246, 7
  %v250 = vadd.f32 %v109, %v248
  %v251 = vtanh.pop %v250
  %253 = vset.pattern.permute.xlu0 0
  %254 = vperm.xlu0 %253, %v251
  %v255 = vpop.permute.xlu0 %254
  %v257 = vrot.slane %v17, 4
  %v259 = vmul.f32 %v255, %v257
  %260 = vset.pattern.permute.xlu0 1
  %261 = vperm.xlu0 %260, %v251
  %v262 = vpop.permute.xlu0 %261
  %v264 = vmul.f32 %v262, %v226
  %265 = vset.pattern.permute.xlu0 2
  %266 = vperm.xlu0 %265, %v251
  %v267 = vpop.permute.xlu0 %266
  %v269 = vmul.f32 %v267, %v195
  %270 = vset.pattern.permute.xlu0 3
  %271 = vperm.xlu0 %270, %v251
  %v272 = vpop.permute.xlu0 %271
  %v274 = vmul.f32 %v272, %v164
  %v275 = vadd.f32 %v259, %v264
  %v276 = vadd.f32 %v269, %v274
  %v277 = vadd.f32 %v275, %v276
  %v279 = vrot.slane %v277, 7
  %v281 = vadd.f32 %v109, %v279
  %v282 = vtanh.pop %v281
  %284 = vset.pattern.permute.xlu0 0
  %285 = vperm.xlu0 %284, %v282
  %v286 = vpop.permute.xlu0 %285
  %v288 = vmul.f32 %v286, %v148
  %289 = vset.pattern.permute.xlu0 1
  %290 = vperm.xlu0 %289, %v282
  %v291 = vpop.permute.xlu0 %290
  %v293 = vmul.f32 %v291, %v257
  %294 = vset.pattern.permute.xlu0 2
  %295 = vperm.xlu0 %294, %v282
  %v296 = vpop.permute.xlu0 %295
  %v298 = vmul.f32 %v296, %v226
  %299 = vset.pattern.permute.xlu0 3
  %300 = vperm.xlu0 %299, %v282
  %v301 = vpop.permute.xlu0 %300
  %v303 = vmul.f32 %v301, %v195
  %v304 = vadd.f32 %v288, %v293
  %v305 = vadd.f32 %v298, %v303
  %v306 = vadd.f32 %v304, %v305
  %v308 = vrot.slane %v306, 7
  %v310 = vadd.f32 %v109, %v308
  %v311 = vtanh.pop %v310
  %313 = vset.pattern.permute.xlu0 0
  %314 = vperm.xlu0 %313, %v311
  %v315 = vpop.permute.xlu0 %314
  %v317 = vmul.f32 %v315, %v141
  %318 = vset.pattern.permute.xlu0 1
  %319 = vperm.xlu0 %318, %v311
  %v320 = vpop.permute.xlu0 %319
  %v322 = vmul.f32 %v320, %v148
  %323 = vset.pattern.permute.xlu0 2
  %324 = vperm.xlu0 %323, %v311
  %v325 = vpop.permute.xlu0 %324
  %v327 = vmul.f32 %v325, %v257
  %328 = vset.pattern.permute.xlu0 3
  %329 = vperm.xlu0 %328, %v311
  %v330 = vpop.permute.xlu0 %329
  %v332 = vmul.f32 %v330, %v226
  %v333 = vadd.f32 %v317, %v322
  %v334 = vadd.f32 %v327, %v332
  %v335 = vadd.f32 %v333, %v334
  %v337 = vrot.slane %v335, 7
  %v339 = vadd.f32 %v109, %v337
  %v340 = vtanh.pop %v339
  %vm341 = vcmask 1040384
  %v342 = vsel %vm341, %v122, %v158
  %vm343 = vcmask 1041408
  %v344 = vsel %vm343, %v342, %v189
  %vm345 = vcmask 1042432
  %v346 = vsel %vm345, %v344, %v220
  %vm347 = vcmask 1043456
  %v348 = vsel %vm347, %v346, %v251
  %vm349 = vcmask 1044480
  %v350 = vsel %vm349, %v348, %v282
  %vm351 = vcmask 1045504
  %v352 = vsel %vm351, %v350, %v311
  %vm353 = vcmask 1046528
  %v354 = vsel %vm353, %v352, %v340
  %355 = vst [vmem:[%s4] sm:$0xff] %v354
  // Predicated region
  $region18: #{rnn_forward.1} parent=0 // pred_check
    _
  $region19: #{rnn_forward.1} parent=0 // pred_check_branch
    %357 = sbr.rel (0) target = $region21
  $region20: #{rnn_forward.1} parent=0 // pred_region
    _
  $region21: #{rnn_forward.1} parent=0 // pred_fallthru
    _
  // Predicated region
  $region22: #{rnn_forward.1} parent=0 // pred_check
    _
  $region23: #{rnn_forward.1} parent=0 // pred_check_branch
    %359 = sbr.rel (0) target = $region25
  $region24: #{rnn_forward.1} parent=0 // pred_region
    _
  $region25: #{rnn_forward.1} parent=0 // pred_fallthru
    _

</llo_original>
